<compile_context>
chip_gen: v7x
topology: tpu7x:2x2x1
jax: 0.10.0
libtpu: 0.0.40
codegen_flags: <defaults>
</compile_context>

<pallas_src>
import numpy as np
import jax
import jax.numpy as jnp
from jax.experimental import pallas as pl
from jax.experimental.pallas import tpu as pltpu

TWO_PI = np.float32(2.0 * np.pi)
INV_TWO_PI = np.float32(1.0 / (2.0 * np.pi))

# Conservative per-step VMEM budget: v7x's default scoped limit is 32 MiB; leave headroom
# for double-buffering and compiler scratch so the same chunking works on all generations.
_VMEM_BUDGET_BYTES = 24 * 1024 * 1024


def _mod_2pi(v):
    # torch.remainder(v, 2*pi) for a positive divisor: multiply by a precomputed
    # reciprocal (keeps the EUP slot free for tanh/log), then clamp so the result is
    # strictly in [0, 2*pi) even when v sits within an ulp of a multiple of 2*pi.
    r = v - TWO_PI * jnp.floor(v * INV_TWO_PI)
    r = jnp.where(r >= TWO_PI, r - TWO_PI, r)
    r = jnp.where(r < 0.0, r + TWO_PI, r)
    return r


def make_2d_link_active_stripes(shape, mu, off):
    """numpy mirror of the torch mask builder (init-time glue, not hot path)."""
    assert len(shape) == 3 and shape[0] == 2 and mu in (0, 1)
    mask = np.zeros(shape, dtype=np.float32)
    if mu == 0:
        mask[0, :, 0::4] = 1.0
    else:
        mask[1, 0::4] = 1.0
    nu = 1 - mu
    mask = np.roll(mask, off, axis=nu + 1)
    return mask


def gauge_equiv_coupling_kernel(x_ref, mask_ref, alpha_ref, t_ref, fx_ref, logj_ref):
    # x_ref block: (2, L, W) with W = Bc*L lanes, batch-major segments of L sites each.
    L = x_ref.shape[1]
    W = x_ref.shape[2]

    x0 = x_ref[0]          # mu=0 links, (L, W)
    x1 = x_ref[1]          # mu=1 links, (L, W)

    # compute_u1_plaq(x, mu=0, nu=1):
    #   plaq = x0 + roll(x1, -1, x-axis) - roll(x0, -1, y-axis) - x1
    # x-axis roll -> plain sublane rotate (shift = L-1 == -1 under jnp.roll semantics).
    roll_x1 = pltpu.roll(x1, shift=L - 1, axis=0)

    # y-axis roll -> segmented lane roll within each batch segment of L lanes:
    # ordinary lanes take the global roll by -1 (shift = W-1); segment-end lanes take
    # the global roll by +(L-1), which wraps back to their own segment's first lane.
    lane = jax.lax.broadcasted_iota(jnp.int32, (L, W), 1)
    seg_end = (lane % L) == (L - 1)
    roll_x0 = jnp.where(seg_end,
                        pltpu.roll(x0, shift=L - 1, axis=1),
                        pltpu.roll(x0, shift=W - 1, axis=1))

    plaq = x0 + roll_x1 - roll_x0 - x1

    # TODO(synk): the original notebook uses a CNN-based NCP plaq_coupling; replaced here
    # by a deterministic elementwise invertible flow.
    alpha = alpha_ref[...]
    t = t_ref[...]
    th = jnp.tanh(plaq)
    delta_plaq = t + alpha * th            # == new_plaq - plaq

    # logJ lane-partials: reduce only the sublane (x) axis in-kernel; the per-batch
    # cross-lane reduction is finished outside the kernel.
    logj_ref[...] = jnp.sum(jnp.log(1.0 + alpha * (1.0 - th * th)),
                            axis=0, keepdims=True)

    # delta_links = stack((delta_plaq, -delta_plaq), dim=1); masked mod-2pi update as a
    # select (mask is exactly 0/1).
    fx_ref[0] = jnp.where(mask_ref[0] != 0.0, _mod_2pi(x0 + delta_plaq), x0)
    fx_ref[1] = jnp.where(mask_ref[1] != 0.0, _mod_2pi(x1 - delta_plaq), x1)


def _step_vmem_bytes(bc, L):
    blk = 2 * L * bc * L * 4                                       # one x / fx block (f32)
    resident = (2 * L * bc * L + 2 * L * bc * L + bc * L) * 4      # mask + alpha + t + logJ
    return 4 * blk + resident                                      # x & fx double-buffered


def gauge_equiv_coupling_forward(x, mask, alpha, t, *, num_steps=None,
                                 core_parallel=False):
    B, nd, L, L2 = x.shape
    assert nd == 2 and L == L2

    if num_steps is None:
        # Single grid step by default (single-TC v5e/v6e: extra grid steps are pure
        # pipeline overhead); chunk the batch along lanes only if a whole-batch step
        # would not fit the VMEM budget (sized for v7x).
        num_steps = B
        for ns in range(1, B + 1):
            if B % ns == 0 and _step_vmem_bytes(B // ns, L) <= _VMEM_BUDGET_BYTES:
                num_steps = ns
                break
    assert B % num_steps == 0
    Bc = B // num_steps
    W = Bc * L
    if num_steps > 1:
        # chunked blocks must stay lane-dense / (8,128)-legal
        assert W % 128 == 0, "batch-chunk lane width must be a multiple of 128"

    # Batch-in-lanes layout (layout plumbing only): (B, 2, L, L) -> (2, L, B*L).
    x_ld = jnp.transpose(x, (1, 2, 0, 3)).reshape(2, L, B * L)
    # Per-site parameters tiled across the batch segments of one chunk (stay resident).
    mask_ld = jnp.tile(mask[:, :, None, :], (1, 1, Bc, 1)).reshape(2, L, W)
    alpha_ld = jnp.tile(alpha[:, None, :], (1, Bc, 1)).reshape(L, W)
    t_ld = jnp.tile(t[:, None, :], (1, Bc, 1)).reshape(L, W)

    if core_parallel and num_steps > 1:
        # v7x: actually split the batch-chunk axis across the two TensorCores.
        dim_sem = (pltpu.CORE_PARALLEL,)
    else:
        dim_sem = ("arbitrary",)

    grid_spec = pltpu.PrefetchScalarGridSpec(
        num_scalar_prefetch=0,
        grid=(num_steps,),
        in_specs=[
            pl.BlockSpec((2, L, W), lambda s: (0, 0, s)),   # x (lane-chunked batch)
            pl.BlockSpec((2, L, W), lambda s: (0, 0, 0)),   # active mask (resident)
            pl.BlockSpec((L, W), lambda s: (0, 0)),         # alpha (resident)
            pl.BlockSpec((L, W), lambda s: (0, 0)),         # t (resident)
        ],
        out_specs=(
            pl.BlockSpec((2, L, W), lambda s: (0, 0, s)),   # fx (lane-dense stores)
            pl.BlockSpec((1, W), lambda s: (0, s)),         # logJ lane partials
        ),
    )

    fx_ld, logj_part = pl.pallas_call(
        gauge_equiv_coupling_kernel,
        grid_spec=grid_spec,
        out_shape=(
            jax.ShapeDtypeStruct((2, L, B * L), x.dtype),
            jax.ShapeDtypeStruct((1, B * L), jnp.float32),
        ),
        input_output_aliases={0: 0},   # fx fully overwrites x's lane-dense buffer
        compiler_params=pltpu.CompilerParams(dimension_semantics=dim_sem),
    )(x_ld, mask_ld, alpha_ld, t_ld)

    fx = jnp.transpose(fx_ld.reshape(2, L, B, L), (2, 0, 1, 3))
    logJ = logj_part.reshape(B, L).sum(axis=1)
    return fx, logJ


def reference_forward(x, mask, alpha, t):
    """pure-JAX reference with identical semantics (mirrors the torch forward)."""
    plaq = (x[:, 0] + jnp.roll(x[:, 1], -1, axis=1)
            - jnp.roll(x[:, 0], -1, axis=2) - x[:, 1])
    th = jnp.tanh(plaq)
    logJ = jnp.sum(jnp.log(1.0 + alpha * (1.0 - th * th)), axis=(1, 2))
    delta_plaq = t + alpha * th
    delta_links = jnp.stack([delta_plaq, -delta_plaq], axis=1)
    fx = mask * _mod_2pi(delta_links + x) + (1.0 - mask) * x
    return fx, logJ


if __name__ == "__main__":
    B, L = 8, 16   # B*L = 128 lanes -> fully lane-dense blocks
    key = jax.random.PRNGKey(0)
    kx, ka, kt = jax.random.split(key, 3)

    # links: angles in [0, 2*pi)
    x = jax.random.uniform(kx, (B, 2, L, L), jnp.float32, 0.0, float(TWO_PI))
    # deterministic "plaq_coupling" parameters
    alpha = jax.random.uniform(ka, (L, L), jnp.float32, 0.05, 0.5)
    t = jax.random.uniform(kt, (L, L), jnp.float32, -1.0, 1.0)
    # active-link stripe mask (mask_mu=0, mask_off=1)
    mask = jnp.asarray(make_2d_link_active_stripes((2, L, L), mu=0, off=1))

    fwd = jax.jit(gauge_equiv_coupling_forward)
    fx, logJ = jax.block_until_ready(fwd(x, mask, alpha, t))

    fx_ref, logJ_ref = reference_forward(x, mask, alpha, t)
    np.testing.assert_allclose(np.asarray(fx), np.asarray(fx_ref), rtol=1e-4, atol=1e-4)
    np.testing.assert_allclose(np.asarray(logJ), np.asarray(logJ_ref), rtol=1e-4, atol=1e-4)

    print("KERNEL_OK")
</pallas_src>

<mosaic_0001>
module attributes {stable_mosaic.version = 11 : i64} {
  func.func @gauge_equiv_coupling_kernel(%arg0: i32, %arg1: memref<2x16x128xf32, #tpu.memory_space<vmem>>, %arg2: memref<2x16x128xf32, #tpu.memory_space<vmem>>, %arg3: memref<16x128xf32, #tpu.memory_space<vmem>>, %arg4: memref<16x128xf32, #tpu.memory_space<vmem>>, %arg5: memref<2x16x128xf32, #tpu.memory_space<vmem>>, %arg6: memref<1x128xf32, #tpu.memory_space<vmem>>) attributes {dimension_semantics = [#tpu.dimension_semantics<arbitrary>], iteration_bounds = array<i64: 1>, scalar_prefetch = 0 : i64, scratch_operands = 0 : i64, tpu.core_type = #tpu.core_type<tc>, window_params = [{transform_indices = @transform_0, window_bounds = array<i64: 2, 16, 128>}, {pipeline_mode = #tpu.pipeline_mode<synchronous>, transform_indices = @transform_1, window_bounds = array<i64: 2, 16, 128>}, {pipeline_mode = #tpu.pipeline_mode<synchronous>, transform_indices = @transform_2, window_bounds = array<i64: 16, 128>}, {pipeline_mode = #tpu.pipeline_mode<synchronous>, transform_indices = @transform_3, window_bounds = array<i64: 16, 128>}, {transform_indices = @transform_4, window_bounds = array<i64: 2, 16, 128>}, {transform_indices = @transform_5, window_bounds = array<i64: 1, 128>}]} {
    %c0 = arith.constant 0 : index
    %c0_0 = arith.constant 0 : index
    %c0_1 = arith.constant 0 : index
    %0 = vector.load %arg1[%c0, %c0_0, %c0_1] : memref<2x16x128xf32, #tpu.memory_space<vmem>>, vector<1x16x128xf32>
    %1 = vector.shape_cast %0 : vector<1x16x128xf32> to vector<16x128xf32>
    %c1 = arith.constant 1 : index
    %c0_2 = arith.constant 0 : index
    %c0_3 = arith.constant 0 : index
    %2 = vector.load %arg1[%c1, %c0_2, %c0_3] : memref<2x16x128xf32, #tpu.memory_space<vmem>>, vector<1x16x128xf32>
    %3 = vector.shape_cast %2 : vector<1x16x128xf32> to vector<16x128xf32>
    %c15_i32 = arith.constant 15 : i32
    %4 = tpu.dynamic_rotate %3 by %c15_i32 dim 0 : vector<16x128xf32>, i32 -> vector<16x128xf32>
    %5 = tpu.iota {dimensions = array<i32: 1>} : vector<16x128xi32>
    %c16_i32 = arith.constant 16 : i32
    %c0_i32 = arith.constant 0 : i32
    %6 = arith.cmpi eq, %c16_i32, %c0_i32 : i32
    %c1_i32 = arith.constant 1 : i32
    %7 = arith.select %6, %c1_i32, %c16_i32 : i32
    %8 = vector.broadcast %7 : i32 to vector<16x128xi32>
    %9 = arith.remsi %5, %8 : vector<16x128xi32>
    %c0_i32_4 = arith.constant 0 : i32
    %10 = vector.broadcast %c0_i32_4 : i32 to vector<16x128xi32>
    %11 = arith.cmpi ne, %9, %10 : vector<16x128xi32>
    %c0_i32_5 = arith.constant 0 : i32
    %12 = vector.broadcast %c0_i32_5 : i32 to vector<16x128xi32>
    %13 = arith.cmpi slt, %9, %12 : vector<16x128xi32>
    %c0_i32_6 = arith.constant 0 : i32
    %14 = arith.cmpi slt, %7, %c0_i32_6 : i32
    %15 = vector.broadcast %14 : i1 to vector<16x128xi1>
    %16 = vector.broadcast %15 : vector<16x128xi1> to vector<16x128xi1>
    %17 = arith.xori %13, %16 : vector<16x128xi1>
    %18 = arith.andi %17, %11 : vector<16x128xi1>
    %19 = vector.broadcast %7 : i32 to vector<16x128xi32>
    %20 = arith.addi %9, %19 : vector<16x128xi32>
    %21 = arith.select %18, %20, %9 : vector<16x128xi1>, vector<16x128xi32>
    %c15_i32_7 = arith.constant 15 : i32
    %22 = vector.broadcast %c15_i32_7 : i32 to vector<16x128xi32>
    %23 = arith.cmpi eq, %21, %22 : vector<16x128xi32>
    %c15_i32_8 = arith.constant 15 : i32
    %24 = tpu.dynamic_rotate %1 by %c15_i32_8 dim 1 : vector<16x128xf32>, i32 -> vector<16x128xf32>
    %c127_i32 = arith.constant 127 : i32
    %25 = tpu.dynamic_rotate %1 by %c127_i32 dim 1 : vector<16x128xf32>, i32 -> vector<16x128xf32>
    %26 = arith.select %23, %24, %25 : vector<16x128xi1>, vector<16x128xf32>
    %27 = arith.addf %1, %4 : vector<16x128xf32>
    %28 = arith.subf %27, %26 : vector<16x128xf32>
    %29 = arith.subf %28, %3 : vector<16x128xf32>
    %c0_9 = arith.constant 0 : index
    %c0_10 = arith.constant 0 : index
    %30 = vector.load %arg3[%c0_9, %c0_10] : memref<16x128xf32, #tpu.memory_space<vmem>>, vector<16x128xf32>
    %c0_11 = arith.constant 0 : index
    %c0_12 = arith.constant 0 : index
    %31 = vector.load %arg4[%c0_11, %c0_12] : memref<16x128xf32, #tpu.memory_space<vmem>>, vector<16x128xf32>
    %32 = math.tanh %29 : vector<16x128xf32>
    %33 = arith.mulf %30, %32 : vector<16x128xf32>
    %34 = arith.addf %31, %33 : vector<16x128xf32>
    %35 = arith.mulf %32, %32 : vector<16x128xf32>
    %cst = arith.constant 1.000000e+00 : f32
    %36 = vector.broadcast %cst : f32 to vector<16x128xf32>
    %37 = arith.subf %36, %35 : vector<16x128xf32>
    %38 = arith.mulf %30, %37 : vector<16x128xf32>
    %cst_13 = arith.constant 1.000000e+00 : f32
    %39 = vector.broadcast %cst_13 : f32 to vector<16x128xf32>
    %40 = arith.addf %39, %38 : vector<16x128xf32>
    %41 = math.log %40 : vector<16x128xf32>
    %cst_14 = arith.constant dense<0.000000e+00> : vector<128xf32>
    %42 = vector.multi_reduction <add>, %41, %cst_14 [0] : vector<16x128xf32> to vector<128xf32>
    %43 = vector.shape_cast %42 : vector<128xf32> to vector<1x128xf32>
    %c0_15 = arith.constant 0 : index
    %c0_16 = arith.constant 0 : index
    %44 = vector.load %arg6[%c0_15, %c0_16] : memref<1x128xf32, #tpu.memory_space<vmem>>, vector<1x128xf32>
    tpu.vector_store %arg6[%c0_15, %c0_16], %43 {strides = array<i32>} : memref<1x128xf32, #tpu.memory_space<vmem>>, vector<1x128xf32>,
    %c0_17 = arith.constant 0 : index
    %c0_18 = arith.constant 0 : index
    %c0_19 = arith.constant 0 : index
    %45 = vector.load %arg2[%c0_17, %c0_18, %c0_19] : memref<2x16x128xf32, #tpu.memory_space<vmem>>, vector<1x16x128xf32>
    %46 = vector.shape_cast %45 : vector<1x16x128xf32> to vector<16x128xf32>
    %cst_20 = arith.constant 0.000000e+00 : f32
    %47 = vector.broadcast %cst_20 : f32 to vector<16x128xf32>
    %48 = arith.cmpf one, %46, %47 : vector<16x128xf32>
    %49 = arith.addf %1, %34 : vector<16x128xf32>
    %cst_21 = arith.constant 0.159154937 : f32
    %50 = vector.broadcast %cst_21 : f32 to vector<16x128xf32>
    %51 = arith.mulf %49, %50 : vector<16x128xf32>
    %52 = math.floor %51 : vector<16x128xf32>
    %cst_22 = arith.constant 6.28318548 : f32
    %53 = vector.broadcast %cst_22 : f32 to vector<16x128xf32>
    %54 = arith.mulf %53, %52 : vector<16x128xf32>
    %55 = arith.subf %49, %54 : vector<16x128xf32>
    %cst_23 = arith.constant 6.28318548 : f32
    %56 = vector.broadcast %cst_23 : f32 to vector<16x128xf32>
    %57 = arith.cmpf oge, %55, %56 : vector<16x128xf32>
    %cst_24 = arith.constant 6.28318548 : f32
    %58 = vector.broadcast %cst_24 : f32 to vector<16x128xf32>
    %59 = arith.subf %55, %58 : vector<16x128xf32>
    %60 = arith.select %57, %59, %55 : vector<16x128xi1>, vector<16x128xf32>
    %cst_25 = arith.constant 0.000000e+00 : f32
    %61 = vector.broadcast %cst_25 : f32 to vector<16x128xf32>
    %62 = arith.cmpf olt, %60, %61 : vector<16x128xf32>
    %cst_26 = arith.constant 6.28318548 : f32
    %63 = vector.broadcast %cst_26 : f32 to vector<16x128xf32>
    %64 = arith.addf %60, %63 : vector<16x128xf32>
    %65 = arith.select %62, %64, %60 : vector<16x128xi1>, vector<16x128xf32>
    %66 = arith.select %48, %65, %1 : vector<16x128xi1>, vector<16x128xf32>
    %c0_27 = arith.constant 0 : index
    %c0_28 = arith.constant 0 : index
    %c0_29 = arith.constant 0 : index
    %67 = vector.load %arg5[%c0_27, %c0_28, %c0_29] : memref<2x16x128xf32, #tpu.memory_space<vmem>>, vector<1x16x128xf32>
    %68 = vector.shape_cast %67 : vector<1x16x128xf32> to vector<16x128xf32>
    %69 = vector.shape_cast %66 : vector<16x128xf32> to vector<1x16x128xf32>
    tpu.vector_store %arg5[%c0_27, %c0_28, %c0_29], %69 {strides = array<i32>} : memref<2x16x128xf32, #tpu.memory_space<vmem>>, vector<1x16x128xf32>,
    %c1_30 = arith.constant 1 : index
    %c0_31 = arith.constant 0 : index
    %c0_32 = arith.constant 0 : index
    %70 = vector.load %arg2[%c1_30, %c0_31, %c0_32] : memref<2x16x128xf32, #tpu.memory_space<vmem>>, vector<1x16x128xf32>
    %71 = vector.shape_cast %70 : vector<1x16x128xf32> to vector<16x128xf32>
    %cst_33 = arith.constant 0.000000e+00 : f32
    %72 = vector.broadcast %cst_33 : f32 to vector<16x128xf32>
    %73 = arith.cmpf one, %71, %72 : vector<16x128xf32>
    %74 = arith.subf %3, %34 : vector<16x128xf32>
    %cst_34 = arith.constant 0.159154937 : f32
    %75 = vector.broadcast %cst_34 : f32 to vector<16x128xf32>
    %76 = arith.mulf %74, %75 : vector<16x128xf32>
    %77 = math.floor %76 : vector<16x128xf32>
    %cst_35 = arith.constant 6.28318548 : f32
    %78 = vector.broadcast %cst_35 : f32 to vector<16x128xf32>
    %79 = arith.mulf %78, %77 : vector<16x128xf32>
    %80 = arith.subf %74, %79 : vector<16x128xf32>
    %cst_36 = arith.constant 6.28318548 : f32
    %81 = vector.broadcast %cst_36 : f32 to vector<16x128xf32>
    %82 = arith.cmpf oge, %80, %81 : vector<16x128xf32>
    %cst_37 = arith.constant 6.28318548 : f32
    %83 = vector.broadcast %cst_37 : f32 to vector<16x128xf32>
    %84 = arith.subf %80, %83 : vector<16x128xf32>
    %85 = arith.select %82, %84, %80 : vector<16x128xi1>, vector<16x128xf32>
    %cst_38 = arith.constant 0.000000e+00 : f32
    %86 = vector.broadcast %cst_38 : f32 to vector<16x128xf32>
    %87 = arith.cmpf olt, %85, %86 : vector<16x128xf32>
    %cst_39 = arith.constant 6.28318548 : f32
    %88 = vector.broadcast %cst_39 : f32 to vector<16x128xf32>
    %89 = arith.addf %85, %88 : vector<16x128xf32>
    %90 = arith.select %87, %89, %85 : vector<16x128xi1>, vector<16x128xf32>
    %91 = arith.select %73, %90, %3 : vector<16x128xi1>, vector<16x128xf32>
    %c1_40 = arith.constant 1 : index
    %c0_41 = arith.constant 0 : index
    %c0_42 = arith.constant 0 : index
    %92 = vector.load %arg5[%c1_40, %c0_41, %c0_42] : memref<2x16x128xf32, #tpu.memory_space<vmem>>, vector<1x16x128xf32>
    %93 = vector.shape_cast %92 : vector<1x16x128xf32> to vector<16x128xf32>
    %94 = vector.shape_cast %91 : vector<16x128xf32> to vector<1x16x128xf32>
    tpu.vector_store %arg5[%c1_40, %c0_41, %c0_42], %94 {strides = array<i32>} : memref<2x16x128xf32, #tpu.memory_space<vmem>>, vector<1x16x128xf32>,
    return
  }
  func.func @transform_0(%arg0: i32) -> (i32, i32, i32) {
    %c0_i32 = arith.constant 0 : i32
    %c0_i32_0 = arith.constant 0 : i32
    %c0_i32_1 = arith.constant 0 : i32
    return %c0_i32, %c0_i32_0, %arg0 : i32, i32, i32
  }
  func.func @transform_1(%arg0: i32) -> (i32, i32, i32) {
    %c0_i32 = arith.constant 0 : i32
    %c0_i32_0 = arith.constant 0 : i32
    %c0_i32_1 = arith.constant 0 : i32
    %c0_i32_2 = arith.constant 0 : i32
    return %c0_i32, %c0_i32_0, %c0_i32_1 : i32, i32, i32
  }
  func.func @transform_2(%arg0: i32) -> (i32, i32) {
    %c0_i32 = arith.constant 0 : i32
    %c0_i32_0 = arith.constant 0 : i32
    %c0_i32_1 = arith.constant 0 : i32
    return %c0_i32, %c0_i32_0 : i32, i32
  }
  func.func @transform_3(%arg0: i32) -> (i32, i32) {
    %c0_i32 = arith.constant 0 : i32
    %c0_i32_0 = arith.constant 0 : i32
    %c0_i32_1 = arith.constant 0 : i32
    return %c0_i32, %c0_i32_0 : i32, i32
  }
  func.func @transform_4(%arg0: i32) -> (i32, i32, i32) {
    %c0_i32 = arith.constant 0 : i32
    %c0_i32_0 = arith.constant 0 : i32
    %c0_i32_1 = arith.constant 0 : i32
    return %c0_i32, %c0_i32_0, %arg0 : i32, i32, i32
  }
  func.func @transform_5(%arg0: i32) -> (i32, i32) {
    %c0_i32 = arith.constant 0 : i32
    %c0_i32_0 = arith.constant 0 : i32
    return %c0_i32, %arg0 : i32, i32
  }
}

</mosaic_0001>

<llo_original>
// kernel: tile.19
$region0: #{tile.19}
  %s0 = inlined_call_operand.vmem [shape: f32[16,8,1,1,16], index: 0, kind: input, shape index: {}]
  %s1 = inlined_call_operand.vmem [shape: f32[16,128], index: 1, kind: output, shape index: {}]
  %v2 = vld [vmem:[%s0] ss:$8 sm:$0xf]
  %v3 = vld [vmem:[%s0] ss:$8 sm:$0xf0]
  %vm4 = vcmask 1047556
  %v5 = vsel %vm4, %v3, %v2
  %vm6 = vcmask 130048
  %7 = vst.msk [vmem:[%s1] sm:$0xff] %vm6, %v5
  %s8 = scalar_lea.vmem %s0, 64
  %v9 = vld [vmem:[%s8] ss:$8 sm:$0xf]
  %s10 = scalar_lea.vmem %s0, 64
  %v11 = vld [vmem:[%s10] ss:$8 sm:$0xf0]
  %vm12 = vcmask 1047556
  %v13 = vsel %vm12, %v11, %v9
  %vm14 = vcmask 130048
  %s15 = scalar_lea.vmem %s1, 8
  %16 = vst.msk [vmem:[%s15] sm:$0xff] %vm14, %v13
  %s17 = scalar_lea.vmem %s0, 7
  %v18 = vld [vmem:[%s17] ss:$8 sm:$0xf]
  %s19 = scalar_lea.vmem %s0, 7
  %v20 = vld [vmem:[%s19] ss:$8 sm:$0xf0]
  %vm21 = vcmask 1047556
  %v22 = vsel %vm21, %v20, %v18
  %23 = vrot.lane.b32.xlu0 %v22, 112
  %v24 = vpop.permute.xlu0 %23
  %vm25 = vcmask 1048448
  %26 = vst.msk [vmem:[%s1] sm:$0xff] %vm25, %v24
  %s27 = scalar_lea.vmem %s0, 71
  %v28 = vld [vmem:[%s27] ss:$8 sm:$0xf]
  %s29 = scalar_lea.vmem %s0, 71
  %v30 = vld [vmem:[%s29] ss:$8 sm:$0xf0]
  %vm31 = vcmask 1047556
  %v32 = vsel %vm31, %v30, %v28
  %33 = vrot.lane.b32.xlu0 %v32, 112
  %v34 = vpop.permute.xlu0 %33
  %vm35 = vcmask 1048448
  %s36 = scalar_lea.vmem %s1, 8
  %37 = vst.msk [vmem:[%s36] sm:$0xff] %vm35, %v34
  %s38 = scalar_lea.vmem %s0, 6
  %v39 = vld [vmem:[%s38] ss:$8 sm:$0xf]
  %s40 = scalar_lea.vmem %s0, 6
  %v41 = vld [vmem:[%s40] ss:$8 sm:$0xf0]
  %vm42 = vcmask 1047556
  %v43 = vsel %vm42, %v41, %v39
  %44 = vrot.lane.b32.xlu0 %v43, 96
  %v45 = vpop.permute.xlu0 %44
  %vm46 = vcmask 917248
  %47 = vst.msk [vmem:[%s1] sm:$0xff] %vm46, %v45
  %s48 = scalar_lea.vmem %s0, 70
  %v49 = vld [vmem:[%s48] ss:$8 sm:$0xf]
  %s50 = scalar_lea.vmem %s0, 70
  %v51 = vld [vmem:[%s50] ss:$8 sm:$0xf0]
  %vm52 = vcmask 1047556
  %v53 = vsel %vm52, %v51, %v49
  %54 = vrot.lane.b32.xlu0 %v53, 96
  %v55 = vpop.permute.xlu0 %54
  %vm56 = vcmask 917248
  %s57 = scalar_lea.vmem %s1, 8
  %58 = vst.msk [vmem:[%s57] sm:$0xff] %vm56, %v55
  %s59 = scalar_lea.vmem %s0, 5
  %v60 = vld [vmem:[%s59] ss:$8 sm:$0xf]
  %s61 = scalar_lea.vmem %s0, 5
  %v62 = vld [vmem:[%s61] ss:$8 sm:$0xf0]
  %vm63 = vcmask 1047556
  %v64 = vsel %vm63, %v62, %v60
  %65 = vrot.lane.b32.xlu0 %v64, 80
  %v66 = vpop.permute.xlu0 %65
  %vm67 = vcmask 786048
  %68 = vst.msk [vmem:[%s1] sm:$0xff] %vm67, %v66
  %s69 = scalar_lea.vmem %s0, 69
  %v70 = vld [vmem:[%s69] ss:$8 sm:$0xf]
  %s71 = scalar_lea.vmem %s0, 69
  %v72 = vld [vmem:[%s71] ss:$8 sm:$0xf0]
  %vm73 = vcmask 1047556
  %v74 = vsel %vm73, %v72, %v70
  %75 = vrot.lane.b32.xlu0 %v74, 80
  %v76 = vpop.permute.xlu0 %75
  %vm77 = vcmask 786048
  %s78 = scalar_lea.vmem %s1, 8
  %79 = vst.msk [vmem:[%s78] sm:$0xff] %vm77, %v76
  %s80 = scalar_lea.vmem %s0, 4
  %v81 = vld [vmem:[%s80] ss:$8 sm:$0xf]
  %s82 = scalar_lea.vmem %s0, 4
  %v83 = vld [vmem:[%s82] ss:$8 sm:$0xf0]
  %vm84 = vcmask 1047556
  %v85 = vsel %vm84, %v83, %v81
  %86 = vrot.lane.b32.xlu0 %v85, 64
  %v87 = vpop.permute.xlu0 %86
  %vm88 = vcmask 654848
  %89 = vst.msk [vmem:[%s1] sm:$0xff] %vm88, %v87
  %s90 = scalar_lea.vmem %s0, 68
  %v91 = vld [vmem:[%s90] ss:$8 sm:$0xf]
  %s92 = scalar_lea.vmem %s0, 68
  %v93 = vld [vmem:[%s92] ss:$8 sm:$0xf0]
  %vm94 = vcmask 1047556
  %v95 = vsel %vm94, %v93, %v91
  %96 = vrot.lane.b32.xlu0 %v95, 64
  %v97 = vpop.permute.xlu0 %96
  %vm98 = vcmask 654848
  %s99 = scalar_lea.vmem %s1, 8
  %100 = vst.msk [vmem:[%s99] sm:$0xff] %vm98, %v97
  %s101 = scalar_lea.vmem %s0, 3
  %v102 = vld [vmem:[%s101] ss:$8 sm:$0xf]
  %s103 = scalar_lea.vmem %s0, 3
  %v104 = vld [vmem:[%s103] ss:$8 sm:$0xf0]
  %vm105 = vcmask 1047556
  %v106 = vsel %vm105, %v104, %v102
  %107 = vrot.lane.b32.xlu0 %v106, 48
  %v108 = vpop.permute.xlu0 %107
  %vm109 = vcmask 523648
  %110 = vst.msk [vmem:[%s1] sm:$0xff] %vm109, %v108
  %s111 = scalar_lea.vmem %s0, 67
  %v112 = vld [vmem:[%s111] ss:$8 sm:$0xf]
  %s113 = scalar_lea.vmem %s0, 67
  %v114 = vld [vmem:[%s113] ss:$8 sm:$0xf0]
  %vm115 = vcmask 1047556
  %v116 = vsel %vm115, %v114, %v112
  %117 = vrot.lane.b32.xlu0 %v116, 48
  %v118 = vpop.permute.xlu0 %117
  %vm119 = vcmask 523648
  %s120 = scalar_lea.vmem %s1, 8
  %121 = vst.msk [vmem:[%s120] sm:$0xff] %vm119, %v118
  %s122 = scalar_lea.vmem %s0, 2
  %v123 = vld [vmem:[%s122] ss:$8 sm:$0xf]
  %s124 = scalar_lea.vmem %s0, 2
  %v125 = vld [vmem:[%s124] ss:$8 sm:$0xf0]
  %vm126 = vcmask 1047556
  %v127 = vsel %vm126, %v125, %v123
  %128 = vrot.lane.b32.xlu0 %v127, 32
  %v129 = vpop.permute.xlu0 %128
  %vm130 = vcmask 392448
  %131 = vst.msk [vmem:[%s1] sm:$0xff] %vm130, %v129
  %s132 = scalar_lea.vmem %s0, 66
  %v133 = vld [vmem:[%s132] ss:$8 sm:$0xf]
  %s134 = scalar_lea.vmem %s0, 66
  %v135 = vld [vmem:[%s134] ss:$8 sm:$0xf0]
  %vm136 = vcmask 1047556
  %v137 = vsel %vm136, %v135, %v133
  %138 = vrot.lane.b32.xlu0 %v137, 32
  %v139 = vpop.permute.xlu0 %138
  %vm140 = vcmask 392448
  %s141 = scalar_lea.vmem %s1, 8
  %142 = vst.msk [vmem:[%s141] sm:$0xff] %vm140, %v139
  %s143 = scalar_lea.vmem %s0, 1
  %v144 = vld [vmem:[%s143] ss:$8 sm:$0xf]
  %s145 = scalar_lea.vmem %s0, 1
  %v146 = vld [vmem:[%s145] ss:$8 sm:$0xf0]
  %vm147 = vcmask 1047556
  %v148 = vsel %vm147, %v146, %v144
  %149 = vrot.lane.b32.xlu0 %v148, 16
  %v150 = vpop.permute.xlu0 %149
  %vm151 = vcmask 261248
  %152 = vst.msk [vmem:[%s1] sm:$0xff] %vm151, %v150
  %s153 = scalar_lea.vmem %s0, 65
  %v154 = vld [vmem:[%s153] ss:$8 sm:$0xf]
  %s155 = scalar_lea.vmem %s0, 65
  %v156 = vld [vmem:[%s155] ss:$8 sm:$0xf0]
  %vm157 = vcmask 1047556
  %v158 = vsel %vm157, %v156, %v154
  %159 = vrot.lane.b32.xlu0 %v158, 16
  %v160 = vpop.permute.xlu0 %159
  %vm161 = vcmask 261248
  %s162 = scalar_lea.vmem %s1, 8
  %163 = vst.msk [vmem:[%s162] sm:$0xff] %vm161, %v160

// kernel: tile.15
$region0: #{tile.15}
  %s0 = inlined_call_operand.vmem [shape: f32[2,16,8,1,1,16], index: 0, kind: input, shape index: {}]
  %s1 = inlined_call_operand.vmem [shape: f32[2,16,128], index: 1, kind: output, shape index: {}]
  %v2 = vld [vmem:[%s0] ss:$8 sm:$0xf]
  %v3 = vld [vmem:[%s0] ss:$8 sm:$0xf0]
  %vm4 = vcmask 1047556
  %v5 = vsel %vm4, %v3, %v2
  %vm6 = vcmask 130048
  %7 = vst.msk [vmem:[%s1] sm:$0xff] %vm6, %v5
  %s8 = scalar_lea.vmem %s0, 64
  %v9 = vld [vmem:[%s8] ss:$8 sm:$0xf]
  %s10 = scalar_lea.vmem %s0, 64
  %v11 = vld [vmem:[%s10] ss:$8 sm:$0xf0]
  %vm12 = vcmask 1047556
  %v13 = vsel %vm12, %v11, %v9
  %vm14 = vcmask 130048
  %s15 = scalar_lea.vmem %s1, 8
  %16 = vst.msk [vmem:[%s15] sm:$0xff] %vm14, %v13
  %s17 = scalar_lea.vmem %s0, 128
  %v18 = vld [vmem:[%s17] ss:$8 sm:$0xf]
  %s19 = scalar_lea.vmem %s0, 128
  %v20 = vld [vmem:[%s19] ss:$8 sm:$0xf0]
  %vm21 = vcmask 1047556
  %v22 = vsel %vm21, %v20, %v18
  %vm23 = vcmask 130048
  %s24 = scalar_lea.vmem %s1, 16
  %25 = vst.msk [vmem:[%s24] sm:$0xff] %vm23, %v22
  %s26 = scalar_lea.vmem %s0, 192
  %v27 = vld [vmem:[%s26] ss:$8 sm:$0xf]
  %s28 = scalar_lea.vmem %s0, 192
  %v29 = vld [vmem:[%s28] ss:$8 sm:$0xf0]
  %vm30 = vcmask 1047556
  %v31 = vsel %vm30, %v29, %v27
  %vm32 = vcmask 130048
  %s33 = scalar_lea.vmem %s1, 24
  %34 = vst.msk [vmem:[%s33] sm:$0xff] %vm32, %v31
  %s35 = scalar_lea.vmem %s0, 7
  %v36 = vld [vmem:[%s35] ss:$8 sm:$0xf]
  %s37 = scalar_lea.vmem %s0, 7
  %v38 = vld [vmem:[%s37] ss:$8 sm:$0xf0]
  %vm39 = vcmask 1047556
  %v40 = vsel %vm39, %v38, %v36
  %41 = vrot.lane.b32.xlu0 %v40, 112
  %v42 = vpop.permute.xlu0 %41
  %vm43 = vcmask 1048448
  %44 = vst.msk [vmem:[%s1] sm:$0xff] %vm43, %v42
  %s45 = scalar_lea.vmem %s0, 71
  %v46 = vld [vmem:[%s45] ss:$8 sm:$0xf]
  %s47 = scalar_lea.vmem %s0, 71
  %v48 = vld [vmem:[%s47] ss:$8 sm:$0xf0]
  %vm49 = vcmask 1047556
  %v50 = vsel %vm49, %v48, %v46
  %51 = vrot.lane.b32.xlu0 %v50, 112
  %v52 = vpop.permute.xlu0 %51
  %vm53 = vcmask 1048448
  %s54 = scalar_lea.vmem %s1, 8
  %55 = vst.msk [vmem:[%s54] sm:$0xff] %vm53, %v52
  %s56 = scalar_lea.vmem %s0, 135
  %v57 = vld [vmem:[%s56] ss:$8 sm:$0xf]
  %s58 = scalar_lea.vmem %s0, 135
  %v59 = vld [vmem:[%s58] ss:$8 sm:$0xf0]
  %vm60 = vcmask 1047556
  %v61 = vsel %vm60, %v59, %v57
  %62 = vrot.lane.b32.xlu0 %v61, 112
  %v63 = vpop.permute.xlu0 %62
  %vm64 = vcmask 1048448
  %s65 = scalar_lea.vmem %s1, 16
  %66 = vst.msk [vmem:[%s65] sm:$0xff] %vm64, %v63
  %s67 = scalar_lea.vmem %s0, 199
  %v68 = vld [vmem:[%s67] ss:$8 sm:$0xf]
  %s69 = scalar_lea.vmem %s0, 199
  %v70 = vld [vmem:[%s69] ss:$8 sm:$0xf0]
  %vm71 = vcmask 1047556
  %v72 = vsel %vm71, %v70, %v68
  %73 = vrot.lane.b32.xlu0 %v72, 112
  %v74 = vpop.permute.xlu0 %73
  %vm75 = vcmask 1048448
  %s76 = scalar_lea.vmem %s1, 24
  %77 = vst.msk [vmem:[%s76] sm:$0xff] %vm75, %v74
  %s78 = scalar_lea.vmem %s0, 6
  %v79 = vld [vmem:[%s78] ss:$8 sm:$0xf]
  %s80 = scalar_lea.vmem %s0, 6
  %v81 = vld [vmem:[%s80] ss:$8 sm:$0xf0]
  %vm82 = vcmask 1047556
  %v83 = vsel %vm82, %v81, %v79
  %84 = vrot.lane.b32.xlu0 %v83, 96
  %v85 = vpop.permute.xlu0 %84
  %vm86 = vcmask 917248
  %87 = vst.msk [vmem:[%s1] sm:$0xff] %vm86, %v85
  %s88 = scalar_lea.vmem %s0, 70
  %v89 = vld [vmem:[%s88] ss:$8 sm:$0xf]
  %s90 = scalar_lea.vmem %s0, 70
  %v91 = vld [vmem:[%s90] ss:$8 sm:$0xf0]
  %vm92 = vcmask 1047556
  %v93 = vsel %vm92, %v91, %v89
  %94 = vrot.lane.b32.xlu0 %v93, 96
  %v95 = vpop.permute.xlu0 %94
  %vm96 = vcmask 917248
  %s97 = scalar_lea.vmem %s1, 8
  %98 = vst.msk [vmem:[%s97] sm:$0xff] %vm96, %v95
  %s99 = scalar_lea.vmem %s0, 134
  %v100 = vld [vmem:[%s99] ss:$8 sm:$0xf]
  %s101 = scalar_lea.vmem %s0, 134
  %v102 = vld [vmem:[%s101] ss:$8 sm:$0xf0]
  %vm103 = vcmask 1047556
  %v104 = vsel %vm103, %v102, %v100
  %105 = vrot.lane.b32.xlu0 %v104, 96
  %v106 = vpop.permute.xlu0 %105
  %vm107 = vcmask 917248
  %s108 = scalar_lea.vmem %s1, 16
  %109 = vst.msk [vmem:[%s108] sm:$0xff] %vm107, %v106
  %s110 = scalar_lea.vmem %s0, 198
  %v111 = vld [vmem:[%s110] ss:$8 sm:$0xf]
  %s112 = scalar_lea.vmem %s0, 198
  %v113 = vld [vmem:[%s112] ss:$8 sm:$0xf0]
  %vm114 = vcmask 1047556
  %v115 = vsel %vm114, %v113, %v111
  %116 = vrot.lane.b32.xlu0 %v115, 96
  %v117 = vpop.permute.xlu0 %116
  %vm118 = vcmask 917248
  %s119 = scalar_lea.vmem %s1, 24
  %120 = vst.msk [vmem:[%s119] sm:$0xff] %vm118, %v117
  %s121 = scalar_lea.vmem %s0, 5
  %v122 = vld [vmem:[%s121] ss:$8 sm:$0xf]
  %s123 = scalar_lea.vmem %s0, 5
  %v124 = vld [vmem:[%s123] ss:$8 sm:$0xf0]
  %vm125 = vcmask 1047556
  %v126 = vsel %vm125, %v124, %v122
  %127 = vrot.lane.b32.xlu0 %v126, 80
  %v128 = vpop.permute.xlu0 %127
  %vm129 = vcmask 786048
  %130 = vst.msk [vmem:[%s1] sm:$0xff] %vm129, %v128
  %s131 = scalar_lea.vmem %s0, 69
  %v132 = vld [vmem:[%s131] ss:$8 sm:$0xf]
  %s133 = scalar_lea.vmem %s0, 69
  %v134 = vld [vmem:[%s133] ss:$8 sm:$0xf0]
  %vm135 = vcmask 1047556
  %v136 = vsel %vm135, %v134, %v132
  %137 = vrot.lane.b32.xlu0 %v136, 80
  %v138 = vpop.permute.xlu0 %137
  %vm139 = vcmask 786048
  %s140 = scalar_lea.vmem %s1, 8
  %141 = vst.msk [vmem:[%s140] sm:$0xff] %vm139, %v138
  %s142 = scalar_lea.vmem %s0, 133
  %v143 = vld [vmem:[%s142] ss:$8 sm:$0xf]
  %s144 = scalar_lea.vmem %s0, 133
  %v145 = vld [vmem:[%s144] ss:$8 sm:$0xf0]
  %vm146 = vcmask 1047556
  %v147 = vsel %vm146, %v145, %v143
  %148 = vrot.lane.b32.xlu0 %v147, 80
  %v149 = vpop.permute.xlu0 %148
  %vm150 = vcmask 786048
  %s151 = scalar_lea.vmem %s1, 16
  %152 = vst.msk [vmem:[%s151] sm:$0xff] %vm150, %v149
  %s153 = scalar_lea.vmem %s0, 197
  %v154 = vld [vmem:[%s153] ss:$8 sm:$0xf]
  %s155 = scalar_lea.vmem %s0, 197
  %v156 = vld [vmem:[%s155] ss:$8 sm:$0xf0]
  %vm157 = vcmask 1047556
  %v158 = vsel %vm157, %v156, %v154
  %159 = vrot.lane.b32.xlu0 %v158, 80
  %v160 = vpop.permute.xlu0 %159
  %vm161 = vcmask 786048
  %s162 = scalar_lea.vmem %s1, 24
  %163 = vst.msk [vmem:[%s162] sm:$0xff] %vm161, %v160
  %s164 = scalar_lea.vmem %s0, 4
  %v165 = vld [vmem:[%s164] ss:$8 sm:$0xf]
  %s166 = scalar_lea.vmem %s0, 4
  %v167 = vld [vmem:[%s166] ss:$8 sm:$0xf0]
  %vm168 = vcmask 1047556
  %v169 = vsel %vm168, %v167, %v165
  %170 = vrot.lane.b32.xlu0 %v169, 64
  %v171 = vpop.permute.xlu0 %170
  %vm172 = vcmask 654848
  %173 = vst.msk [vmem:[%s1] sm:$0xff] %vm172, %v171
  %s174 = scalar_lea.vmem %s0, 68
  %v175 = vld [vmem:[%s174] ss:$8 sm:$0xf]
  %s176 = scalar_lea.vmem %s0, 68
  %v177 = vld [vmem:[%s176] ss:$8 sm:$0xf0]
  %vm178 = vcmask 1047556
  %v179 = vsel %vm178, %v177, %v175
  %180 = vrot.lane.b32.xlu0 %v179, 64
  %v181 = vpop.permute.xlu0 %180
  %vm182 = vcmask 654848
  %s183 = scalar_lea.vmem %s1, 8
  %184 = vst.msk [vmem:[%s183] sm:$0xff] %vm182, %v181
  %s185 = scalar_lea.vmem %s0, 132
  %v186 = vld [vmem:[%s185] ss:$8 sm:$0xf]
  %s187 = scalar_lea.vmem %s0, 132
  %v188 = vld [vmem:[%s187] ss:$8 sm:$0xf0]
  %vm189 = vcmask 1047556
  %v190 = vsel %vm189, %v188, %v186
  %191 = vrot.lane.b32.xlu0 %v190, 64
  %v192 = vpop.permute.xlu0 %191
  %vm193 = vcmask 654848
  %s194 = scalar_lea.vmem %s1, 16
  %195 = vst.msk [vmem:[%s194] sm:$0xff] %vm193, %v192
  %s196 = scalar_lea.vmem %s0, 196
  %v197 = vld [vmem:[%s196] ss:$8 sm:$0xf]
  %s198 = scalar_lea.vmem %s0, 196
  %v199 = vld [vmem:[%s198] ss:$8 sm:$0xf0]
  %vm200 = vcmask 1047556
  %v201 = vsel %vm200, %v199, %v197
  %202 = vrot.lane.b32.xlu0 %v201, 64
  %v203 = vpop.permute.xlu0 %202
  %vm204 = vcmask 654848
  %s205 = scalar_lea.vmem %s1, 24
  %206 = vst.msk [vmem:[%s205] sm:$0xff] %vm204, %v203
  %s207 = scalar_lea.vmem %s0, 3
  %v208 = vld [vmem:[%s207] ss:$8 sm:$0xf]
  %s209 = scalar_lea.vmem %s0, 3
  %v210 = vld [vmem:[%s209] ss:$8 sm:$0xf0]
  %vm211 = vcmask 1047556
  %v212 = vsel %vm211, %v210, %v208
  %213 = vrot.lane.b32.xlu0 %v212, 48
  %v214 = vpop.permute.xlu0 %213
  %vm215 = vcmask 523648
  %216 = vst.msk [vmem:[%s1] sm:$0xff] %vm215, %v214
  %s217 = scalar_lea.vmem %s0, 67
  %v218 = vld [vmem:[%s217] ss:$8 sm:$0xf]
  %s219 = scalar_lea.vmem %s0, 67
  %v220 = vld [vmem:[%s219] ss:$8 sm:$0xf0]
  %vm221 = vcmask 1047556
  %v222 = vsel %vm221, %v220, %v218
  %223 = vrot.lane.b32.xlu0 %v222, 48
  %v224 = vpop.permute.xlu0 %223
  %vm225 = vcmask 523648
  %s226 = scalar_lea.vmem %s1, 8
  %227 = vst.msk [vmem:[%s226] sm:$0xff] %vm225, %v224
  %s228 = scalar_lea.vmem %s0, 131
  %v229 = vld [vmem:[%s228] ss:$8 sm:$0xf]
  %s230 = scalar_lea.vmem %s0, 131
  %v231 = vld [vmem:[%s230] ss:$8 sm:$0xf0]
  %vm232 = vcmask 1047556
  %v233 = vsel %vm232, %v231, %v229
  %234 = vrot.lane.b32.xlu0 %v233, 48
  %v235 = vpop.permute.xlu0 %234
  %vm236 = vcmask 523648
  %s237 = scalar_lea.vmem %s1, 16
  %238 = vst.msk [vmem:[%s237] sm:$0xff] %vm236, %v235
  %s239 = scalar_lea.vmem %s0, 195
  %v240 = vld [vmem:[%s239] ss:$8 sm:$0xf]
  %s241 = scalar_lea.vmem %s0, 195
  %v242 = vld [vmem:[%s241] ss:$8 sm:$0xf0]
  %vm243 = vcmask 1047556
  %v244 = vsel %vm243, %v242, %v240
  %245 = vrot.lane.b32.xlu0 %v244, 48
  %v246 = vpop.permute.xlu0 %245
  %vm247 = vcmask 523648
  %s248 = scalar_lea.vmem %s1, 24
  %249 = vst.msk [vmem:[%s248] sm:$0xff] %vm247, %v246
  %s250 = scalar_lea.vmem %s0, 2
  %v251 = vld [vmem:[%s250] ss:$8 sm:$0xf]
  %s252 = scalar_lea.vmem %s0, 2
  %v253 = vld [vmem:[%s252] ss:$8 sm:$0xf0]
  %vm254 = vcmask 1047556
  %v255 = vsel %vm254, %v253, %v251
  %256 = vrot.lane.b32.xlu0 %v255, 32
  %v257 = vpop.permute.xlu0 %256
  %vm258 = vcmask 392448
  %259 = vst.msk [vmem:[%s1] sm:$0xff] %vm258, %v257
  %s260 = scalar_lea.vmem %s0, 66
  %v261 = vld [vmem:[%s260] ss:$8 sm:$0xf]
  %s262 = scalar_lea.vmem %s0, 66
  %v263 = vld [vmem:[%s262] ss:$8 sm:$0xf0]
  %vm264 = vcmask 1047556
  %v265 = vsel %vm264, %v263, %v261
  %266 = vrot.lane.b32.xlu0 %v265, 32
  %v267 = vpop.permute.xlu0 %266
  %vm268 = vcmask 392448
  %s269 = scalar_lea.vmem %s1, 8
  %270 = vst.msk [vmem:[%s269] sm:$0xff] %vm268, %v267
  %s271 = scalar_lea.vmem %s0, 130
  %v272 = vld [vmem:[%s271] ss:$8 sm:$0xf]
  %s273 = scalar_lea.vmem %s0, 130
  %v274 = vld [vmem:[%s273] ss:$8 sm:$0xf0]
  %vm275 = vcmask 1047556
  %v276 = vsel %vm275, %v274, %v272
  %277 = vrot.lane.b32.xlu0 %v276, 32
  %v278 = vpop.permute.xlu0 %277
  %vm279 = vcmask 392448
  %s280 = scalar_lea.vmem %s1, 16
  %281 = vst.msk [vmem:[%s280] sm:$0xff] %vm279, %v278
  %s282 = scalar_lea.vmem %s0, 194
  %v283 = vld [vmem:[%s282] ss:$8 sm:$0xf]
  %s284 = scalar_lea.vmem %s0, 194
  %v285 = vld [vmem:[%s284] ss:$8 sm:$0xf0]
  %vm286 = vcmask 1047556
  %v287 = vsel %vm286, %v285, %v283
  %288 = vrot.lane.b32.xlu0 %v287, 32
  %v289 = vpop.permute.xlu0 %288
  %vm290 = vcmask 392448
  %s291 = scalar_lea.vmem %s1, 24
  %292 = vst.msk [vmem:[%s291] sm:$0xff] %vm290, %v289
  %s293 = scalar_lea.vmem %s0, 1
  %v294 = vld [vmem:[%s293] ss:$8 sm:$0xf]
  %s295 = scalar_lea.vmem %s0, 1
  %v296 = vld [vmem:[%s295] ss:$8 sm:$0xf0]
  %vm297 = vcmask 1047556
  %v298 = vsel %vm297, %v296, %v294
  %299 = vrot.lane.b32.xlu0 %v298, 16
  %v300 = vpop.permute.xlu0 %299
  %vm301 = vcmask 261248
  %302 = vst.msk [vmem:[%s1] sm:$0xff] %vm301, %v300
  %s303 = scalar_lea.vmem %s0, 65
  %v304 = vld [vmem:[%s303] ss:$8 sm:$0xf]
  %s305 = scalar_lea.vmem %s0, 65
  %v306 = vld [vmem:[%s305] ss:$8 sm:$0xf0]
  %vm307 = vcmask 1047556
  %v308 = vsel %vm307, %v306, %v304
  %309 = vrot.lane.b32.xlu0 %v308, 16
  %v310 = vpop.permute.xlu0 %309
  %vm311 = vcmask 261248
  %s312 = scalar_lea.vmem %s1, 8
  %313 = vst.msk [vmem:[%s312] sm:$0xff] %vm311, %v310
  %s314 = scalar_lea.vmem %s0, 129
  %v315 = vld [vmem:[%s314] ss:$8 sm:$0xf]
  %s316 = scalar_lea.vmem %s0, 129
  %v317 = vld [vmem:[%s316] ss:$8 sm:$0xf0]
  %vm318 = vcmask 1047556
  %v319 = vsel %vm318, %v317, %v315
  %320 = vrot.lane.b32.xlu0 %v319, 16
  %v321 = vpop.permute.xlu0 %320
  %vm322 = vcmask 261248
  %s323 = scalar_lea.vmem %s1, 16
  %324 = vst.msk [vmem:[%s323] sm:$0xff] %vm322, %v321
  %s325 = scalar_lea.vmem %s0, 193
  %v326 = vld [vmem:[%s325] ss:$8 sm:$0xf]
  %s327 = scalar_lea.vmem %s0, 193
  %v328 = vld [vmem:[%s327] ss:$8 sm:$0xf0]
  %vm329 = vcmask 1047556
  %v330 = vsel %vm329, %v328, %v326
  %331 = vrot.lane.b32.xlu0 %v330, 16
  %v332 = vpop.permute.xlu0 %331
  %vm333 = vcmask 261248
  %s334 = scalar_lea.vmem %s1, 24
  %335 = vst.msk [vmem:[%s334] sm:$0xff] %vm333, %v332

// kernel: gauge_equiv_coupling_forward.1
$region0: #{gauge_equiv_coupling_forward.1}
  #allocation0 [shape = 'u32[]', space=smem, size = 0x4, offset = 0x4, fixed_abs, tag = 'smem constant byte address 0x4 - core index']
  #allocation1 [shape = 'u32[144,128]{1,0:T(1,128)}', space=vmem, size = 0x12000, scoped, tag = 'internal scratch']
  %s0 = inlined_call_operand.vmem [shape: f32[2,16,128], index: 0, kind: input, shape index: {}, may-alias: {0,4}]
  %s1 = inlined_call_operand.vmem [shape: f32[2,16,128], index: 1, kind: input, shape index: {}]
  %s2 = inlined_call_operand.vmem [shape: f32[16,128], index: 2, kind: input, shape index: {}]
  %s3 = inlined_call_operand.vmem [shape: f32[16,128], index: 3, kind: input, shape index: {}]
  %s4 = inlined_call_operand.vmem [shape: f32[2,16,128], index: 4, kind: output, shape index: {0}, may-alias: {0,4}]
  %s5 = inlined_call_operand.vmem [shape: f32[1,128], index: 5, kind: output, shape index: {1}]
  %6 = xla_tuple %s4, %s5
  %s7 = sld [smem:[#allocation0]]
  $region34: #{gauge_equiv_coupling_forward.1} parent=0
    _
  %s9 = ssub.s32 1, %s7
  %s10 = scalar_select 0, %s9, %s7
  // Predicated region
  $region2: #{gauge_equiv_coupling_forward.1} parent=0 // pred_check
    _
  $region3: #{gauge_equiv_coupling_forward.1} parent=0 // pred_check_branch
    %12 = sbr.rel (0) target = $region5
  $region4: #{gauge_equiv_coupling_forward.1} parent=0 // pred_region
    _
  $region5: #{gauge_equiv_coupling_forward.1} parent=0 // pred_fallthru
    _
  // Predicated region
  $region6: #{gauge_equiv_coupling_forward.1} parent=0 // pred_check
    _
  $region7: #{gauge_equiv_coupling_forward.1} parent=0 // pred_check_branch
    %14 = sbr.rel (0) target = $region9
  $region8: #{gauge_equiv_coupling_forward.1} parent=0 // pred_region
    _
  $region9: #{gauge_equiv_coupling_forward.1} parent=0 // pred_fallthru
    _
  // Predicated region
  $region10: #{gauge_equiv_coupling_forward.1} parent=0 // pred_check
    _
  $region11: #{gauge_equiv_coupling_forward.1} parent=0 // pred_check_branch
    %16 = sbr.rel (0) target = $region13
  $region12: #{gauge_equiv_coupling_forward.1} parent=0 // pred_region
    _
  $region13: #{gauge_equiv_coupling_forward.1} parent=0 // pred_fallthru
    _
  // Predicated region
  $region14: #{gauge_equiv_coupling_forward.1} parent=0 // pred_check
    _
  $region15: #{gauge_equiv_coupling_forward.1} parent=0 // pred_check_branch
    %18 = sbr.rel (0) target = $region17
  $region16: #{gauge_equiv_coupling_forward.1} parent=0 // pred_region
    _
  $region17: #{gauge_equiv_coupling_forward.1} parent=0 // pred_fallthru
    _
  %v19 = vld [vmem:[%s0] sm:$0xff]
  %v20 = vld [vmem:[%s0 + $0x8] sm:$0xff]
  %s21 = scalar_lea.vmem %s0, 16
  %v22 = vld [vmem:[%s21] sm:$0xff]
  %v23 = vld [vmem:[%s21 + $0x8] sm:$0xff]
  %v24 = vrot.slane %v22, 1
  %v25 = vrot.slane %v23, 1
  %v26 = vlaneseq
  %v27 = vshrl.u32 %v26, 7
  %vm28 = vcmp.lt.s32.totalorder %v27, 7
  %v29 = vsel %vm28, %v24, %v25
  %v30 = vsel %vm28, %v25, %v24
  %v31 = vlaneseq
  %v32 = vand.u32 %v31, 127
  %vm33 = vcmp.lt.s32.totalorder %v32, 0
  %v34 = vsub.s32 0, %v32
  %v35 = vsel %vm33, %v34, %v32
  %v36 = vshrl.u32 %v35, 4
  %v37 = vand.u32 %v35, 15
  %v38 = vsub.s32 0, %v37
  %v39 = vsel %vm33, %v38, %v37
  %vm40 = vcmp.ne.s32.totalorder %v39, 0
  %vm41 = vcmp.lt.s32.totalorder %v39, 0
  %vm42 = vmand %vm41, %vm40
  %v43 = vadd.s32 %v39, 16
  %v44 = vsel %vm42, %v43, %v39
  %vm45 = vcmp.eq.s32.totalorder %v44, 15
  %46 = vrot.lane.b32.xlu0 %v19, 15
  %v47 = vpop.permute.xlu0 %46
  %48 = vrot.lane.b32.xlu0 %v20, 15
  %v49 = vpop.permute.xlu0 %48
  %50 = vrot.lane.b32.xlu0 %v19, 127
  %v51 = vpop.permute.xlu0 %50
  %52 = vrot.lane.b32.xlu0 %v20, 127
  %v53 = vpop.permute.xlu0 %52
  %v54 = vsel %vm45, %v47, %v51
  %v55 = vsel %vm45, %v49, %v53
  %v56 = vadd.f32 %v19, %v29
  %v57 = vadd.f32 %v20, %v30
  %v58 = vsub.f32 %v56, %v54
  %v59 = vsub.f32 %v57, %v55
  %v60 = vsub.f32 %v58, %v22
  %v61 = vsub.f32 %v59, %v23
  %v62 = vld [vmem:[%s2] sm:$0xff]
  %v63 = vld [vmem:[%s2 + $0x8] sm:$0xff]
  %v64 = vld [vmem:[%s3] sm:$0xff]
  %v65 = vld [vmem:[%s3 + $0x8] sm:$0xff]
  %v66 = vtanh.pop %v60
  %v67 = vtanh.pop %v61
  %v68 = vmul.f32 %v62, %v66
  %v69 = vmul.f32 %v63, %v67
  %v70 = vadd.f32 %v64, %v68
  %v71 = vadd.f32 %v65, %v69
  %v72 = vmul.f32 %v66, %v66
  %v73 = vmul.f32 %v67, %v67
  %v74 = vsub.f32 1.0, %v72
  %v75 = vsub.f32 1.0, %v73
  %v76 = vmul.f32 %v62, %v74
  %v77 = vmul.f32 %v63, %v75
  %v78 = vadd.f32 %v76, 1.0
  %v79 = vadd.f32 %v77, 1.0
  %v80 = vlog2.pop %v78
  %v81 = vmul.f32 %v80, 0.6931472
  %v82 = vlog2.pop %v79
  %v83 = vmul.f32 %v82, 0.6931472
  %v84 = vadd.f32 %v81, %v83
  %v85 = vrot.slane %v84, 4
  %v86 = vadd.f32 %v84, %v85
  %v87 = vrot.slane %v86, 2
  %v88 = vadd.f32 %v86, %v87
  %v89 = vrot.slane %v88, 1
  %v90 = vadd.f32 %v88, %v89
  %91 = vst [vmem:[%s5] sm:$0x1] %v90
  %v92 = vld [vmem:[%s1] sm:$0xff]
  %v93 = vld [vmem:[%s1 + $0x8] sm:$0xff]
  %vm94 = vcmp.ne.f32.partialorder %v92, 0.0
  %vm95 = vcmp.ne.f32.partialorder %v93, 0.0
  %v96 = vadd.f32 %v19, %v70
  %v97 = vadd.f32 %v20, %v71
  %v98 = vmul.f32 %v96, 0.15915494
  %v99 = vmul.f32 %v97, 0.15915494
  %v100 = vfloor.f32 %v98
  %v101 = vfloor.f32 %v99
  %v102 = vmul.f32 %v100, 6.2831855
  %v103 = vmul.f32 %v101, 6.2831855
  %v104 = vsub.f32 %v96, %v102
  %v105 = vsub.f32 %v97, %v103
  %vm106 = vcmp.ge.f32.partialorder %v104, 6.2831855
  %vm107 = vcmp.ge.f32.partialorder %v105, 6.2831855
  %v108 = vsub.f32 %v104, 6.2831855
  %v109 = vsub.f32 %v105, 6.2831855
  %v110 = vsel %vm106, %v108, %v104
  %v111 = vsel %vm107, %v109, %v105
  %vm112 = vcmp.lt.f32.partialorder %v110, 0.0
  %vm113 = vcmp.lt.f32.partialorder %v111, 0.0
  %v114 = vadd.f32 %v110, 6.2831855
  %v115 = vadd.f32 %v111, 6.2831855
  %v116 = vsel %vm112, %v114, %v110
  %v117 = vsel %vm113, %v115, %v111
  %v118 = vsel %vm94, %v116, %v19
  %v119 = vsel %vm95, %v117, %v20
  %120 = vst [vmem:[%s4] sm:$0xff] %v118
  %121 = vst [vmem:[%s4 + $0x8] sm:$0xff] %v119
  %s122 = scalar_lea.vmem %s1, 16
  %v123 = vld [vmem:[%s122] sm:$0xff]
  %v124 = vld [vmem:[%s122 + $0x8] sm:$0xff]
  %vm125 = vcmp.ne.f32.partialorder %v123, 0.0
  %vm126 = vcmp.ne.f32.partialorder %v124, 0.0
  %v127 = vsub.f32 %v22, %v70
  %v128 = vsub.f32 %v23, %v71
  %v129 = vmul.f32 %v127, 0.15915494
  %v130 = vmul.f32 %v128, 0.15915494
  %v131 = vfloor.f32 %v129
  %v132 = vfloor.f32 %v130
  %v133 = vmul.f32 %v131, 6.2831855
  %v134 = vmul.f32 %v132, 6.2831855
  %v135 = vsub.f32 %v127, %v133
  %v136 = vsub.f32 %v128, %v134
  %vm137 = vcmp.ge.f32.partialorder %v135, 6.2831855
  %vm138 = vcmp.ge.f32.partialorder %v136, 6.2831855
  %v139 = vsub.f32 %v135, 6.2831855
  %v140 = vsub.f32 %v136, 6.2831855
  %v141 = vsel %vm137, %v139, %v135
  %v142 = vsel %vm138, %v140, %v136
  %vm143 = vcmp.lt.f32.partialorder %v141, 0.0
  %vm144 = vcmp.lt.f32.partialorder %v142, 0.0
  %v145 = vadd.f32 %v141, 6.2831855
  %v146 = vadd.f32 %v142, 6.2831855
  %v147 = vsel %vm143, %v145, %v141
  %v148 = vsel %vm144, %v146, %v142
  %v149 = vsel %vm125, %v147, %v22
  %v150 = vsel %vm126, %v148, %v23
  %s151 = scalar_lea.vmem %s4, 16
  %152 = vst [vmem:[%s151] sm:$0xff] %v149
  %153 = vst [vmem:[%s151 + $0x8] sm:$0xff] %v150
  // Predicated region
  $region18: #{gauge_equiv_coupling_forward.1} parent=0 // pred_check
    _
  $region19: #{gauge_equiv_coupling_forward.1} parent=0 // pred_check_branch
    %155 = sbr.rel (0) target = $region21
  $region20: #{gauge_equiv_coupling_forward.1} parent=0 // pred_region
    _
  $region21: #{gauge_equiv_coupling_forward.1} parent=0 // pred_fallthru
    _
  // Predicated region
  $region22: #{gauge_equiv_coupling_forward.1} parent=0 // pred_check
    _
  $region23: #{gauge_equiv_coupling_forward.1} parent=0 // pred_check_branch
    %157 = sbr.rel (0) target = $region25
  $region24: #{gauge_equiv_coupling_forward.1} parent=0 // pred_region
    _
  $region25: #{gauge_equiv_coupling_forward.1} parent=0 // pred_fallthru
    _
  // Predicated region
  $region26: #{gauge_equiv_coupling_forward.1} parent=0 // pred_check
    _
  $region27: #{gauge_equiv_coupling_forward.1} parent=0 // pred_check_branch
    %159 = sbr.rel (0) target = $region29
  $region28: #{gauge_equiv_coupling_forward.1} parent=0 // pred_region
    _
  $region29: #{gauge_equiv_coupling_forward.1} parent=0 // pred_fallthru
    _
  // Predicated region
  $region30: #{gauge_equiv_coupling_forward.1} parent=0 // pred_check
    _
  $region31: #{gauge_equiv_coupling_forward.1} parent=0 // pred_check_branch
    %161 = sbr.rel (0) target = $region33
  $region32: #{gauge_equiv_coupling_forward.1} parent=0 // pred_region
    _
  $region33: #{gauge_equiv_coupling_forward.1} parent=0 // pred_fallthru
    _

</llo_original>
